<compile_context>
chip_gen: v7x
topology: tpu7x:2x2x1
jax: 0.10.0
libtpu: 0.0.40
codegen_flags: <defaults>
</compile_context>

<pallas_src>
import functools

import jax
import jax.numpy as jnp
import numpy as np
from jax.experimental import pallas as pl
from jax.experimental.pallas import tpu as pltpu


# --------------------------------------------------------------------------
# kernel
# --------------------------------------------------------------------------
def resblock_kernel(x_ref, w1_ref, b1_ref, w2_ref, b2_ref, o_ref,
                    *, H, Btile, WCi, WCo):
    """One batch tile (Btile images) per grid step, everything lane-dense.

    x_ref  : (R, WCi)            f32   R = Btile*H rows, W*C folded into lanes
    w1_ref : (3*WCi, 2*WCo)      bf16  banded conv1 weights (dh-major rows)
    b1_ref : (1, 2*WCo)          f32
    w2_ref : (3*WCo, 2*WCo)      bf16  banded conv2 weights
    b2_ref : (1, 2*WCo)          f32
    o_ref  : (R, WCo)            f32   output
    """
    R = Btile * H
    x = x_ref[...]                                       # (R, WCi) f32, kept for residual

    # Per-image first/last-row masks (static Btile/H -> a handful of VPU cmps).
    # They zero the rows that a sublane roll wraps across an image boundary,
    # reproducing the conv's zero padding in H.
    row_id = jax.lax.broadcasted_iota(jnp.int32, (R, 2 * WCo), 0)
    first = functools.reduce(jnp.logical_or,
                             [row_id == b * H for b in range(Btile)])
    last = functools.reduce(jnp.logical_or,
                            [row_id == b * H + (H - 1) for b in range(Btile)])

    def conv_mfm(inp_f32, w_ref, b_ref, wc_in):
        # single bf16 cast of the unshifted activations (review item #3)
        xb = inp_f32.astype(jnp.bfloat16)                # (R, wc_in)
        # one MXU matmul per dh tap; dw shift + W zero-padding live in the band
        q0 = jnp.dot(xb, w_ref[0 * wc_in:1 * wc_in, :],
                     preferred_element_type=jnp.float32)
        q1 = jnp.dot(xb, w_ref[1 * wc_in:2 * wc_in, :],
                     preferred_element_type=jnp.float32)
        q2 = jnp.dot(xb, w_ref[2 * wc_in:3 * wc_in, :],
                     preferred_element_type=jnp.float32)
        # y[r] = Q0[r-1] + Q1[r] + Q2[r+1]  (zeros across image boundaries).
        # The +/-1 row shift is a 32-bit sublane roll on the XLU (idle slot),
        # applied to the f32 partial sums -> no scratch, no unaligned slices.
        up = jnp.where(first, 0.0, pltpu.roll(q0, shift=1, axis=0))
        dn = jnp.where(last, 0.0, pltpu.roll(q2, shift=R - 1, axis=0))
        acc = q1 + up + dn + b_ref[...]                  # (R, 2*WCo) f32
        # max-feature-map: columns are half-major (half*W*Cout + w*Cout + c)
        return jnp.maximum(acc[:, :WCo], acc[:, WCo:])   # (R, WCo) f32

    m1 = conv_mfm(x, w1_ref, b1_ref, WCi)
    m2 = conv_mfm(m1, w2_ref, b2_ref, WCo)

    # residual add in f32 (Cin == Cout, identical lane layout)
    o_ref[...] = (m2 + x).astype(o_ref.dtype)


# --------------------------------------------------------------------------
# wrapper-side weight / bias repacking (done once, outside the kernel)
# --------------------------------------------------------------------------
def _band_weights(w_hwio, W):
    """(3,3,Cin,2*Cout) HWIO -> (3*W*Cin, 2*W*Cout) lane-dense banded matrix.

    Row index    : dh*W*Cin + wi*Cin + ci
    Column index : half*W*Cout + wo*Cout + co
    Entry is w[dh, dw, ci, half*Cout+co] where wi == wo + dw - 1 (3x3 SAME band,
    out-of-range taps -> zero, reproducing the conv's zero padding in W).
    """
    kh, kw, Cin, C2 = w_hwio.shape
    Cout = C2 // 2
    ws = w_hwio.reshape(kh, kw, Cin, 2, Cout)             # [dh, dw, ci, half, co]
    S = jnp.stack([jnp.eye(W, W, k=1 - dw, dtype=w_hwio.dtype)
                   for dw in range(kw)])                  # (kw, W_in, W_out)
    wb = jnp.einsum('dio,hdcxf->hicxof', S, ws)           # (kh, W, Cin, 2, W, Cout)
    return wb.reshape(kh * W * Cin, 2 * W * Cout)


def _band_bias(b, W):
    """(2*Cout,) -> (1, 2*W*Cout) matching the banded output column layout."""
    Cout = b.shape[0] // 2
    return jnp.broadcast_to(b.reshape(2, 1, Cout), (2, W, Cout)).reshape(
        1, 2 * W * Cout)


# --------------------------------------------------------------------------
# tiling heuristics
# --------------------------------------------------------------------------
def _auto_btile(N, H, target_rows=256):
    """Pick images per grid step so M = Btile*H approaches the MXU depth.

    target_rows=256 suits v6e/v7x (use 128 on v5e).  When there is enough work
    (N*H >= 2*target_rows) we keep >= 2 grid steps so both v7x TensorCores are
    busy; otherwise we fold everything into as few steps as possible (fewer
    ~0.35us per-step overheads).
    """
    best = 1
    for d in range(1, N + 1):
        if N % d:
            continue
        if d * H > target_rows and d != 1:
            continue
        if N // d < 2 and N * H >= 2 * target_rows:
            continue                       # keep >=2 steps for megacore
        best = max(best, d)
    if best < N and (best * H) % 8:
        best = N                           # non-full blocks must be 8-row aligned
    return best


def _vmem_limit_bytes(R, WCi, WCo):
    """Raise the scoped VMEM limit only when the estimate needs it (v6e has
    128 MiB physical vs 32 MiB default scope; v7x only 64 MiB physical)."""
    act = 2 * (R * WCi + R * WCo) * 4                     # in/out, double-buffered
    wgt = 2 * (3 * WCi * 2 * WCo + 3 * WCo * 2 * WCo) * 2  # bf16 banded weights
    bias = 2 * 2 * (2 * WCo) * 4
    est = act + wgt + bias
    if est <= (24 << 20):
        return None
    return int(min(est * 3 // 2, 100 << 20))


# --------------------------------------------------------------------------
# forward
# --------------------------------------------------------------------------
def resblock_forward(x_nhwc, w1, b1, w2, b2, *, btile=None):
    """x_nhwc: (N,H,W,C) f32; w*: (3,3,C,2C) HWIO; b*: (2C,)."""
    N, H, W, Cin = x_nhwc.shape
    Cout = w1.shape[-1] // 2
    assert Cin == Cout, "resblock residual add requires in_channels == out_channels"
    WCi, WCo = W * Cin, W * Cout

    if btile is None:
        btile = _auto_btile(N, H)
    assert N % btile == 0
    R = btile * H
    grid = (N // btile,)

    # lane-dense repack: rows = (image, h), lanes = (w, c); contiguous reshape
    x2 = x_nhwc.reshape(N * H, WCi)
    w1b = _band_weights(w1, W).astype(jnp.bfloat16)       # (3*WCi, 2*WCo)
    w2b = _band_weights(w2, W).astype(jnp.bfloat16)       # (3*WCo, 2*WCo)
    b1r = _band_bias(b1, W).astype(jnp.float32)
    b2r = _band_bias(b2, W).astype(jnp.float32)

    kern = functools.partial(resblock_kernel, H=H, Btile=btile, WCi=WCi, WCo=WCo)

    out = pl.pallas_call(
        kern,
        out_shape=jax.ShapeDtypeStruct((N * H, WCo), x_nhwc.dtype),
        grid_spec=pltpu.PrefetchScalarGridSpec(
            num_scalar_prefetch=0,
            grid=grid,
            in_specs=[
                pl.BlockSpec((R, WCi), lambda n: (n, 0)),
                # grid-invariant weight/bias blocks: index_map is constant, so
                # they are DMA'd once and stay VMEM-resident across the grid.
                pl.BlockSpec((3 * WCi, 2 * WCo), lambda n: (0, 0)),
                pl.BlockSpec((1, 2 * WCo), lambda n: (0, 0)),
                pl.BlockSpec((3 * WCo, 2 * WCo), lambda n: (0, 0)),
                pl.BlockSpec((1, 2 * WCo), lambda n: (0, 0)),
            ],
            out_specs=pl.BlockSpec((R, WCo), lambda n: (n, 0)),
        ),
        compiler_params=pltpu.CompilerParams(
            dimension_semantics=("parallel",),
            vmem_limit_bytes=_vmem_limit_bytes(R, WCi, WCo)),
    )(x2, w1b, b1r, w2b, b2r)
    return out.reshape(N, H, W, Cout)


# --------------------------------------------------------------------------
# pure-JAX reference for verification (f32)
# --------------------------------------------------------------------------
def mfm_ref(x, w, b, Cout):
    y = jax.lax.conv_general_dilated(
        x, w, window_strides=(1, 1), padding="SAME",
        dimension_numbers=("NHWC", "HWIO", "NHWC")) + b
    return jnp.maximum(y[..., :Cout], y[..., Cout:])


def resblock_ref(x, w1, b1, w2, b2):
    Cout = w1.shape[-1] // 2
    out = mfm_ref(x, w1, b1, Cout)
    out = mfm_ref(out, w2, b2, Cout)
    return out + x


if __name__ == "__main__":
    # small shapes: batch=2, in_channels=out_channels=8, spatial=16x16
    N, H, W, C = 2, 16, 16, 8
    key = jax.random.PRNGKey(0)
    kx, kw1, kb1, kw2, kb2 = jax.random.split(key, 5)

    x = jax.random.normal(kx, (N, H, W, C), jnp.float32)          # NHWC input
    w1 = jax.random.normal(kw1, (3, 3, C, 2 * C), jnp.float32) * 0.1
    b1 = jax.random.normal(kb1, (2 * C,), jnp.float32) * 0.1
    w2 = jax.random.normal(kw2, (3, 3, C, 2 * C), jnp.float32) * 0.1
    b2 = jax.random.normal(kb2, (2 * C,), jnp.float32) * 0.1

    out = resblock_forward(x, w1, b1, w2, b2)
    out = jax.block_until_ready(out)

    ref = resblock_ref(x, w1, b1, w2, b2)
    # bf16 MXU operands (f32 accumulation) -> tolerance loosened vs. pure f32
    np.testing.assert_allclose(np.asarray(out), np.asarray(ref),
                               rtol=5e-2, atol=5e-2)
    print("KERNEL_OK")
</pallas_src>

<mosaic_0001>
module attributes {stable_mosaic.version = 11 : i64} {
  func.func @resblock_kernel(%arg0: i32, %arg1: memref<32x128xf32, #tpu.memory_space<vmem>>, %arg2: memref<384x256xbf16, #tpu.memory_space<vmem>>, %arg3: memref<1x256xf32, #tpu.memory_space<vmem>>, %arg4: memref<384x256xbf16, #tpu.memory_space<vmem>>, %arg5: memref<1x256xf32, #tpu.memory_space<vmem>>, %arg6: memref<32x128xf32, #tpu.memory_space<vmem>>) attributes {dimension_semantics = [#tpu.dimension_semantics<parallel>], iteration_bounds = array<i64: 1>, scalar_prefetch = 0 : i64, scratch_operands = 0 : i64, tpu.core_type = #tpu.core_type<tc>, window_params = [{transform_indices = @transform_0, window_bounds = array<i64: 32, 128>}, {pipeline_mode = #tpu.pipeline_mode<synchronous>, transform_indices = @transform_1, window_bounds = array<i64: 384, 256>}, {pipeline_mode = #tpu.pipeline_mode<synchronous>, transform_indices = @transform_2, window_bounds = array<i64: 1, 256>}, {pipeline_mode = #tpu.pipeline_mode<synchronous>, transform_indices = @transform_3, window_bounds = array<i64: 384, 256>}, {pipeline_mode = #tpu.pipeline_mode<synchronous>, transform_indices = @transform_4, window_bounds = array<i64: 1, 256>}, {transform_indices = @transform_5, window_bounds = array<i64: 32, 128>}]} {
    %c0 = arith.constant 0 : index
    %c0_0 = arith.constant 0 : index
    %0 = vector.load %arg1[%c0, %c0_0] : memref<32x128xf32, #tpu.memory_space<vmem>>, vector<32x128xf32>
    %1 = tpu.iota {dimensions = array<i32: 0>} : vector<32x256xi32>
    %c0_i32 = arith.constant 0 : i32
    %2 = vector.broadcast %c0_i32 : i32 to vector<32x256xi32>
    %3 = arith.cmpi eq, %1, %2 : vector<32x256xi32>
    %c16_i32 = arith.constant 16 : i32
    %4 = vector.broadcast %c16_i32 : i32 to vector<32x256xi32>
    %5 = arith.cmpi eq, %1, %4 : vector<32x256xi32>
    %6 = arith.ori %3, %5 : vector<32x256xi1>
    %c15_i32 = arith.constant 15 : i32
    %7 = vector.broadcast %c15_i32 : i32 to vector<32x256xi32>
    %8 = arith.cmpi eq, %1, %7 : vector<32x256xi32>
    %c31_i32 = arith.constant 31 : i32
    %9 = vector.broadcast %c31_i32 : i32 to vector<32x256xi32>
    %10 = arith.cmpi eq, %1, %9 : vector<32x256xi32>
    %11 = arith.ori %8, %10 : vector<32x256xi1>
    %12 = arith.truncf %0 : vector<32x128xf32> to vector<32x128xbf16>
    %c0_1 = arith.constant 0 : index
    %c0_2 = arith.constant 0 : index
    %13 = vector.load %arg2[%c0_1, %c0_2] : memref<384x256xbf16, #tpu.memory_space<vmem>>, vector<128x256xbf16>
    %cst = arith.constant dense<0.000000e+00> : vector<32x256xf32>
    %14 = tpu.matmul %12, %13, %cst {dimension_numbers = #tpu.dot_dimension_numbers<[1], [0], [0], [1], [0, 0, 1, 1], [], []>} : vector<32x128xbf16>, vector<128x256xbf16>, vector<32x256xf32> -> vector<32x256xf32>
    %c128 = arith.constant 128 : index
    %c0_3 = arith.constant 0 : index
    %15 = vector.load %arg2[%c128, %c0_3] : memref<384x256xbf16, #tpu.memory_space<vmem>>, vector<128x256xbf16>
    %cst_4 = arith.constant dense<0.000000e+00> : vector<32x256xf32>
    %16 = tpu.matmul %12, %15, %cst_4 {dimension_numbers = #tpu.dot_dimension_numbers<[1], [0], [0], [1], [0, 0, 1, 1], [], []>} : vector<32x128xbf16>, vector<128x256xbf16>, vector<32x256xf32> -> vector<32x256xf32>
    %c256 = arith.constant 256 : index
    %c0_5 = arith.constant 0 : index
    %17 = vector.load %arg2[%c256, %c0_5] : memref<384x256xbf16, #tpu.memory_space<vmem>>, vector<128x256xbf16>
    %cst_6 = arith.constant dense<0.000000e+00> : vector<32x256xf32>
    %18 = tpu.matmul %12, %17, %cst_6 {dimension_numbers = #tpu.dot_dimension_numbers<[1], [0], [0], [1], [0, 0, 1, 1], [], []>} : vector<32x128xbf16>, vector<128x256xbf16>, vector<32x256xf32> -> vector<32x256xf32>
    %c1_i32 = arith.constant 1 : i32
    %19 = tpu.dynamic_rotate %14 by %c1_i32 dim 0 : vector<32x256xf32>, i32 -> vector<32x256xf32>
    %cst_7 = arith.constant 0.000000e+00 : f32
    %20 = vector.broadcast %cst_7 : f32 to vector<32x256xf32>
    %21 = arith.select %6, %20, %19 : vector<32x256xi1>, vector<32x256xf32>
    %c31_i32_8 = arith.constant 31 : i32
    %22 = tpu.dynamic_rotate %18 by %c31_i32_8 dim 0 : vector<32x256xf32>, i32 -> vector<32x256xf32>
    %cst_9 = arith.constant 0.000000e+00 : f32
    %23 = vector.broadcast %cst_9 : f32 to vector<32x256xf32>
    %24 = arith.select %11, %23, %22 : vector<32x256xi1>, vector<32x256xf32>
    %25 = arith.addf %16, %21 : vector<32x256xf32>
    %26 = arith.addf %25, %24 : vector<32x256xf32>
    %c0_10 = arith.constant 0 : index
    %c0_11 = arith.constant 0 : index
    %27 = vector.load %arg3[%c0_10, %c0_11] : memref<1x256xf32, #tpu.memory_space<vmem>>, vector<1x256xf32>
    %28 = vector.broadcast %27 : vector<1x256xf32> to vector<32x256xf32>
    %29 = arith.addf %26, %28 : vector<32x256xf32>
    %30 = vector.extract_strided_slice %29 {offsets = [0, 0], sizes = [32, 128], strides = [1, 1]} : vector<32x256xf32> to vector<32x128xf32>
    %31 = vector.extract_strided_slice %29 {offsets = [0, 128], sizes = [32, 128], strides = [1, 1]} : vector<32x256xf32> to vector<32x128xf32>
    %32 = arith.maximumf %30, %31 : vector<32x128xf32>
    %33 = arith.truncf %32 : vector<32x128xf32> to vector<32x128xbf16>
    %c0_12 = arith.constant 0 : index
    %c0_13 = arith.constant 0 : index
    %34 = vector.load %arg4[%c0_12, %c0_13] : memref<384x256xbf16, #tpu.memory_space<vmem>>, vector<128x256xbf16>
    %cst_14 = arith.constant dense<0.000000e+00> : vector<32x256xf32>
    %35 = tpu.matmul %33, %34, %cst_14 {dimension_numbers = #tpu.dot_dimension_numbers<[1], [0], [0], [1], [0, 0, 1, 1], [], []>} : vector<32x128xbf16>, vector<128x256xbf16>, vector<32x256xf32> -> vector<32x256xf32>
    %c128_15 = arith.constant 128 : index
    %c0_16 = arith.constant 0 : index
    %36 = vector.load %arg4[%c128_15, %c0_16] : memref<384x256xbf16, #tpu.memory_space<vmem>>, vector<128x256xbf16>
    %cst_17 = arith.constant dense<0.000000e+00> : vector<32x256xf32>
    %37 = tpu.matmul %33, %36, %cst_17 {dimension_numbers = #tpu.dot_dimension_numbers<[1], [0], [0], [1], [0, 0, 1, 1], [], []>} : vector<32x128xbf16>, vector<128x256xbf16>, vector<32x256xf32> -> vector<32x256xf32>
    %c256_18 = arith.constant 256 : index
    %c0_19 = arith.constant 0 : index
    %38 = vector.load %arg4[%c256_18, %c0_19] : memref<384x256xbf16, #tpu.memory_space<vmem>>, vector<128x256xbf16>
    %cst_20 = arith.constant dense<0.000000e+00> : vector<32x256xf32>
    %39 = tpu.matmul %33, %38, %cst_20 {dimension_numbers = #tpu.dot_dimension_numbers<[1], [0], [0], [1], [0, 0, 1, 1], [], []>} : vector<32x128xbf16>, vector<128x256xbf16>, vector<32x256xf32> -> vector<32x256xf32>
    %c1_i32_21 = arith.constant 1 : i32
    %40 = tpu.dynamic_rotate %35 by %c1_i32_21 dim 0 : vector<32x256xf32>, i32 -> vector<32x256xf32>
    %cst_22 = arith.constant 0.000000e+00 : f32
    %41 = vector.broadcast %cst_22 : f32 to vector<32x256xf32>
    %42 = arith.select %6, %41, %40 : vector<32x256xi1>, vector<32x256xf32>
    %c31_i32_23 = arith.constant 31 : i32
    %43 = tpu.dynamic_rotate %39 by %c31_i32_23 dim 0 : vector<32x256xf32>, i32 -> vector<32x256xf32>
    %cst_24 = arith.constant 0.000000e+00 : f32
    %44 = vector.broadcast %cst_24 : f32 to vector<32x256xf32>
    %45 = arith.select %11, %44, %43 : vector<32x256xi1>, vector<32x256xf32>
    %46 = arith.addf %37, %42 : vector<32x256xf32>
    %47 = arith.addf %46, %45 : vector<32x256xf32>
    %c0_25 = arith.constant 0 : index
    %c0_26 = arith.constant 0 : index
    %48 = vector.load %arg5[%c0_25, %c0_26] : memref<1x256xf32, #tpu.memory_space<vmem>>, vector<1x256xf32>
    %49 = vector.broadcast %48 : vector<1x256xf32> to vector<32x256xf32>
    %50 = arith.addf %47, %49 : vector<32x256xf32>
    %51 = vector.extract_strided_slice %50 {offsets = [0, 0], sizes = [32, 128], strides = [1, 1]} : vector<32x256xf32> to vector<32x128xf32>
    %52 = vector.extract_strided_slice %50 {offsets = [0, 128], sizes = [32, 128], strides = [1, 1]} : vector<32x256xf32> to vector<32x128xf32>
    %53 = arith.maximumf %51, %52 : vector<32x128xf32>
    %54 = arith.addf %53, %0 : vector<32x128xf32>
    %c0_27 = arith.constant 0 : index
    %c0_28 = arith.constant 0 : index
    %55 = vector.load %arg6[%c0_27, %c0_28] : memref<32x128xf32, #tpu.memory_space<vmem>>, vector<32x128xf32>
    tpu.vector_store %arg6[%c0_27, %c0_28], %54 {strides = array<i32>} : memref<32x128xf32, #tpu.memory_space<vmem>>, vector<32x128xf32>,
    return
  }
  func.func @transform_0(%arg0: i32) -> (i32, i32) {
    %c0_i32 = arith.constant 0 : i32
    %c0_i32_0 = arith.constant 0 : i32
    return %arg0, %c0_i32 : i32, i32
  }
  func.func @transform_1(%arg0: i32) -> (i32, i32) {
    %c0_i32 = arith.constant 0 : i32
    %c0_i32_0 = arith.constant 0 : i32
    %c0_i32_1 = arith.constant 0 : i32
    return %c0_i32, %c0_i32_0 : i32, i32
  }
  func.func @transform_2(%arg0: i32) -> (i32, i32) {
    %c0_i32 = arith.constant 0 : i32
    %c0_i32_0 = arith.constant 0 : i32
    %c0_i32_1 = arith.constant 0 : i32
    return %c0_i32, %c0_i32_0 : i32, i32
  }
  func.func @transform_3(%arg0: i32) -> (i32, i32) {
    %c0_i32 = arith.constant 0 : i32
    %c0_i32_0 = arith.constant 0 : i32
    %c0_i32_1 = arith.constant 0 : i32
    return %c0_i32, %c0_i32_0 : i32, i32
  }
  func.func @transform_4(%arg0: i32) -> (i32, i32) {
    %c0_i32 = arith.constant 0 : i32
    %c0_i32_0 = arith.constant 0 : i32
    %c0_i32_1 = arith.constant 0 : i32
    return %c0_i32, %c0_i32_0 : i32, i32
  }
  func.func @transform_5(%arg0: i32) -> (i32, i32) {
    %c0_i32 = arith.constant 0 : i32
    %c0_i32_0 = arith.constant 0 : i32
    return %arg0, %c0_i32 : i32, i32
  }
}

</mosaic_0001>

<llo_original>
// kernel: tpu_custom_call.1
$region0: #{tpu_custom_call.1}
  #allocation0 [shape = 'u32[]', space=smem, size = 0x4, offset = 0x4, fixed_abs, tag = 'smem constant byte address 0x4 - core index']
  #allocation1 [shape = 'u32[144,128]{1,0:T(1,128)}', space=vmem, size = 0x12000, scoped, tag = 'internal scratch']
  %s0 = inlined_call_operand.hbm [shape: f32[32,128], index: 0, kind: input, shape index: {}]
  %s1 = inlined_call_operand.hbm [shape: bf16[384,256], index: 1, kind: input, shape index: {}]
  %s2 = inlined_call_operand.vmem [shape: f32[1,256], index: 2, kind: input, shape index: {}]
  %s3 = inlined_call_operand.hbm [shape: bf16[384,256], index: 3, kind: input, shape index: {}]
  %s4 = inlined_call_operand.vmem [shape: f32[1,256], index: 4, kind: input, shape index: {}]
  %s5 = inlined_call_operand.hbm [shape: f32[32,128], index: 5, kind: output, shape index: {}]
  %s6 = sld [smem:[#allocation0]]
  $region42: #{tpu_custom_call.1} parent=0
    _
  %s8 = ssub.s32 1, %s6
  %s9 = scalar_select 0, %s8, %s6
  $region1: #{tpu_custom_call.1} parent=0
    #allocation2 [shape = 'u8[16384]{0}', space=vmem, size = 0x4000, scoped, tag = 'input window, operand 0, single buffered']
    #allocation3 [shape = 's32[1]{0}', space=sflag, size = 0x4, scoped, tag = 'scoped memory for tpu_custom_call.1']
    #allocation4 [shape = 's32[1]{0}', space=sflag, size = 0x4, scoped, tag = 'scoped memory for tpu_custom_call.1']
    #allocation5 [shape = 'u8[196608]{0}', space=vmem, size = 0x30000, scoped, tag = 'input window, operand 1, single buffered']
    #allocation6 [shape = 's32[1]{0}', space=sflag, size = 0x4, scoped, tag = 'scoped memory for tpu_custom_call.1']
    #allocation7 [shape = 'u8[196608]{0}', space=vmem, size = 0x30000, scoped, tag = 'input window, operand 3, single buffered']
    #allocation8 [shape = 'u8[16384]{0}', space=vmem, size = 0x4000, scoped, tag = 'output window, operand 0, single buffered']
    %10 = vsyncpa [#allocation3], 0
    %11 = vsyncpa [#allocation6], 0
    %12 = vsyncpa [#allocation4], 0
    // Predicated region
    $region2: #{tpu_custom_call.1} parent=1 // pred_check
      _
    $region3: #{tpu_custom_call.1} parent=1 // pred_check_branch
      %14 = sbr.rel (0) target = $region5
    $region4: #{tpu_custom_call.1} parent=1 // pred_region
      %s16 = ssub.s32 512, 512
      %17 = vsyncadd [#allocation3], %s16
      %s18 = sshll.u32 [#allocation2], 4
      %s19 = int_to_ptr.vmem [resolvable:$true] %s18
      %24 = dma.hbm_to_vmem [thread:$0]  %s0, 512, %s19, [#allocation3], 128, 128, 8
    $region5: #{tpu_custom_call.1} parent=1 // pred_fallthru
      _
    // Predicated region
    $region6: #{tpu_custom_call.1} parent=1 // pred_check
      _
    $region7: #{tpu_custom_call.1} parent=1 // pred_check_branch
      %26 = sbr.rel (0) target = $region9
    $region8: #{tpu_custom_call.1} parent=1 // pred_region
      %s28 = ssub.s32 6144, 6144
      %29 = vsyncadd [#allocation6], %s28
      %s30 = sshll.u32 [#allocation5], 4
      %s31 = int_to_ptr.vmem [resolvable:$true] %s30
      %36 = dma.hbm_to_vmem [thread:$0]  %s1, 6144, %s31, [#allocation6], 128, 128, 8
    $region9: #{tpu_custom_call.1} parent=1 // pred_fallthru
      _
    // Predicated region
    $region10: #{tpu_custom_call.1} parent=1 // pred_check
      _
    $region11: #{tpu_custom_call.1} parent=1 // pred_check_branch
      %38 = sbr.rel (0) target = $region13
    $region12: #{tpu_custom_call.1} parent=1 // pred_region
      _
    $region13: #{tpu_custom_call.1} parent=1 // pred_fallthru
      _
    // Predicated region
    $region14: #{tpu_custom_call.1} parent=1 // pred_check
      _
    $region15: #{tpu_custom_call.1} parent=1 // pred_check_branch
      %40 = sbr.rel (0) target = $region17
    $region16: #{tpu_custom_call.1} parent=1 // pred_region
      %s42 = ssub.s32 6144, 6144
      %43 = vsyncadd [#allocation6], %s42
      %s44 = sshll.u32 [#allocation7], 4
      %s45 = int_to_ptr.vmem [resolvable:$true] %s44
      %50 = dma.hbm_to_vmem [thread:$0]  %s3, 6144, %s45, [#allocation6], 128, 128, 8
    $region17: #{tpu_custom_call.1} parent=1 // pred_fallthru
      _
    // Predicated region
    $region18: #{tpu_custom_call.1} parent=1 // pred_check
      _
    $region19: #{tpu_custom_call.1} parent=1 // pred_check_branch
      %52 = sbr.rel (0) target = $region21
    $region20: #{tpu_custom_call.1} parent=1 // pred_region
      _
    $region21: #{tpu_custom_call.1} parent=1 // pred_fallthru
      _
    // Predicated region
    $region22: #{tpu_custom_call.1} parent=1 // pred_check
      _
    $region23: #{tpu_custom_call.1} parent=1 // pred_check_branch
      %54 = sbr.rel (0) target = $region25
    $region24: #{tpu_custom_call.1} parent=1 // pred_region
      %55 = dma.done [#allocation3], 512
    $region25: #{tpu_custom_call.1} parent=1 // pred_fallthru
      _
    // Predicated region
    $region26: #{tpu_custom_call.1} parent=1 // pred_check
      _
    $region27: #{tpu_custom_call.1} parent=1 // pred_check_branch
      %57 = sbr.rel (0) target = $region29
    $region28: #{tpu_custom_call.1} parent=1 // pred_region
      %58 = dma.done [#allocation6], 6144
    $region29: #{tpu_custom_call.1} parent=1 // pred_fallthru
      _
    // Predicated region
    $region30: #{tpu_custom_call.1} parent=1 // pred_check
      _
    $region31: #{tpu_custom_call.1} parent=1 // pred_check_branch
      %60 = sbr.rel (0) target = $region33
    $region32: #{tpu_custom_call.1} parent=1 // pred_region
      %61 = dma.done [#allocation6], 6144
    $region33: #{tpu_custom_call.1} parent=1 // pred_fallthru
      _
    %v63 = vld [vmem:[#allocation2] sm:$0xff]
    %v64 = vld [vmem:[#allocation2 + $0x8] sm:$0xff]
    %v65 = vld [vmem:[#allocation2 + $0x10] sm:$0xff]
    %v66 = vld [vmem:[#allocation2 + $0x18] sm:$0xff]
    %v67 = vlaneseq
    %v68 = vshrl.u32 %v67, 7
    %v69 = vadd.s32 %v68, 8
    %v70 = vadd.s32 %v68, 16
    %v71 = vadd.s32 %v68, 24
    %vm72 = vcmp.eq.s32.totalorder %v68, 0
    %vm73 = vcmp.eq.s32.totalorder %v69, 0
    %vm74 = vcmp.eq.s32.totalorder %v70, 0
    %vm75 = vcmp.eq.s32.totalorder %v71, 0
    %vm76 = vcmp.eq.s32.totalorder %v68, 16
    %vm77 = vcmp.eq.s32.totalorder %v69, 16
    %vm78 = vcmp.eq.s32.totalorder %v70, 16
    %vm79 = vcmp.eq.s32.totalorder %v71, 16
    %vm80 = vmor %vm72, %vm76
    %vm81 = vmor %vm73, %vm77
    %vm82 = vmor %vm74, %vm78
    %vm83 = vmor %vm75, %vm79
    %vm84 = vcmp.eq.s32.totalorder %v68, 15
    %vm85 = vcmp.eq.s32.totalorder %v69, 15
    %vm86 = vcmp.eq.s32.totalorder %v70, 15
    %vm87 = vcmp.eq.s32.totalorder %v71, 15
    %vm88 = vcmp.eq.s32.totalorder %v68, 31
    %vm89 = vcmp.eq.s32.totalorder %v69, 31
    %vm90 = vcmp.eq.s32.totalorder %v70, 31
    %vm91 = vcmp.eq.s32.totalorder %v71, 31
    %vm92 = vmor %vm84, %vm88
    %vm93 = vmor %vm85, %vm89
    %vm94 = vmor %vm86, %vm90
    %vm95 = vmor %vm87, %vm91
    %v96 = vpack.c.bf16 %v64, %v63
    %v97 = vpack.c.bf16 %v66, %v65
    %v98 = vld [vmem:[#allocation5] sm:$0xff]
    %v99 = vld [vmem:[#allocation5 + $0x8] sm:$0xff]
    %v100 = vld [vmem:[#allocation5 + $0x10] sm:$0xff]
    %v101 = vld [vmem:[#allocation5 + $0x18] sm:$0xff]
    %v102 = vld [vmem:[#allocation5 + $0x20] sm:$0xff]
    %v103 = vld [vmem:[#allocation5 + $0x28] sm:$0xff]
    %v104 = vld [vmem:[#allocation5 + $0x30] sm:$0xff]
    %v105 = vld [vmem:[#allocation5 + $0x38] sm:$0xff]
    %v106 = vld [vmem:[#allocation5 + $0x40] sm:$0xff]
    %v107 = vld [vmem:[#allocation5 + $0x48] sm:$0xff]
    %v108 = vld [vmem:[#allocation5 + $0x50] sm:$0xff]
    %v109 = vld [vmem:[#allocation5 + $0x58] sm:$0xff]
    %v110 = vld [vmem:[#allocation5 + $0x60] sm:$0xff]
    %v111 = vld [vmem:[#allocation5 + $0x68] sm:$0xff]
    %v112 = vld [vmem:[#allocation5 + $0x70] sm:$0xff]
    %v113 = vld [vmem:[#allocation5 + $0x78] sm:$0xff]
    %v130 = vunpack.c.l.b16 %v98
    %v131 = vunpack.c.h.b16 %v98
    %v132 = vunpack.c.l.b16 %v99
    %v133 = vunpack.c.h.b16 %v99
    %v134 = vunpack.c.l.b16 %v100
    %v135 = vunpack.c.h.b16 %v100
    %v136 = vunpack.c.l.b16 %v101
    %v137 = vunpack.c.h.b16 %v101
    %v138 = vunpack.c.l.b16 %v102
    %v139 = vunpack.c.h.b16 %v102
    %v140 = vunpack.c.l.b16 %v103
    %v141 = vunpack.c.h.b16 %v103
    %v142 = vunpack.c.l.b16 %v104
    %v143 = vunpack.c.h.b16 %v104
    %v144 = vunpack.c.l.b16 %v105
    %v145 = vunpack.c.h.b16 %v105
    %v146 = vunpack.c.l.b16 %v106
    %v147 = vunpack.c.h.b16 %v106
    %v148 = vunpack.c.l.b16 %v107
    %v149 = vunpack.c.h.b16 %v107
    %v150 = vunpack.c.l.b16 %v108
    %v151 = vunpack.c.h.b16 %v108
    %v152 = vunpack.c.l.b16 %v109
    %v153 = vunpack.c.h.b16 %v109
    %v154 = vunpack.c.l.b16 %v110
    %v155 = vunpack.c.h.b16 %v110
    %v156 = vunpack.c.l.b16 %v111
    %v157 = vunpack.c.h.b16 %v111
    %v158 = vunpack.c.l.b16 %v112
    %v159 = vunpack.c.h.b16 %v112
    %v160 = vunpack.c.l.b16 %v113
    %v161 = vunpack.c.h.b16 %v113
    %v162 = vpack.c.b16 %v132, %v130
    %v163 = vpack.c.b16 %v133, %v131
    %v164 = vpack.c.b16 %v136, %v134
    %v165 = vpack.c.b16 %v137, %v135
    %v166 = vpack.c.b16 %v140, %v138
    %v167 = vpack.c.b16 %v141, %v139
    %v168 = vpack.c.b16 %v144, %v142
    %v169 = vpack.c.b16 %v145, %v143
    %v170 = vpack.c.b16 %v148, %v146
    %v171 = vpack.c.b16 %v149, %v147
    %v172 = vpack.c.b16 %v152, %v150
    %v173 = vpack.c.b16 %v153, %v151
    %v174 = vpack.c.b16 %v156, %v154
    %v175 = vpack.c.b16 %v157, %v155
    %v176 = vpack.c.b16 %v160, %v158
    %v177 = vpack.c.b16 %v161, %v159
    %194 = vmatprep.subr.bf16.mxu0 %v163
    %195 = vmatpush1.bf16.msra.mxu0 %v162
    %196 = vmatprep.subr.bf16.mxu0 %v165
    %197 = vmatpush1.bf16.msra.mxu0 %v164
    %198 = vmatprep.subr.bf16.mxu0 %v167
    %199 = vmatpush1.bf16.msra.mxu0 %v166
    %200 = vmatprep.subr.bf16.mxu0 %v169
    %201 = vmatpush1.bf16.msra.mxu0 %v168
    %202 = vmatprep.subr.bf16.mxu0 %v171
    %203 = vmatpush1.bf16.msra.mxu0 %v170
    %204 = vmatprep.subr.bf16.mxu0 %v173
    %205 = vmatpush1.bf16.msra.mxu0 %v172
    %206 = vmatprep.subr.bf16.mxu0 %v175
    %207 = vmatpush1.bf16.msra.mxu0 %v174
    %208 = vmatprep.subr.bf16.mxu0 %v177
    %209 = vmatpush1.bf16.msra.mxu0 %v176
    %210 = vmatprep.subr.bf16.mxu0 0
    %211 = vmatpush1.bf16.msra.mxu0 0
    %212 = vmatprep.subr.bf16.mxu0 0
    %213 = vmatpush1.bf16.msra.mxu0 0
    %214 = vmatprep.subr.bf16.mxu0 0
    %215 = vmatpush1.bf16.msra.mxu0 0
    %216 = vmatprep.subr.bf16.mxu0 0
    %217 = vmatpush1.bf16.msra.mxu0 0
    %218 = vmatprep.subr.bf16.mxu0 0
    %219 = vmatpush1.bf16.msra.mxu0 0
    %220 = vmatprep.subr.bf16.mxu0 0
    %221 = vmatpush1.bf16.msra.mxu0 0
    %222 = vmatprep.subr.bf16.mxu0 0
    %223 = vmatpush1.bf16.msra.mxu0 0
    %224 = vmatprep.subr.bf16.mxu0 0
    %225 = vmatpush1.bf16.msra.mxu0 0
    %226 = vmatprep.mubr.bf16.mxu0 0
    %227 = vmatmul.mubr.bf16.gmra.mrb[0].mxu0 %v96
    %v228 = vpop.f32.mrb[0].mxu0
    %v229 = vadd.f32 0.0, %v228
    %v230 = vpop.f32.mrb[0].mxu0
    %v231 = vadd.f32 0.0, %v230
    %v232 = vpop.f32.mrb[0].mxu0
    %v233 = vadd.f32 0.0, %v232
    %v234 = vpop.f32.mrb[0].mxu0
    %v235 = vadd.f32 0.0, %v234
    %236 = vmatprep.mubr.bf16.mxu0 0
    %237 = vmatmul.mubr.bf16.gmra.mrb[0].mxu0 %v97
    %v238 = vpop.f32.mrb[0].mxu0
    %v239 = vadd.f32 0.0, %v238
    %v240 = vpop.f32.mrb[0].mxu0
    %v241 = vadd.f32 0.0, %v240
    %v242 = vpop.f32.mrb[0].mxu0
    %v243 = vadd.f32 0.0, %v242
    %v244 = vpop.f32.mrb[0].mxu0
    %v245 = vadd.f32 0.0, %v244
    %246 = vdwg.mxu0
    %v247 = vld [vmem:[#allocation5 + $0x80] sm:$0xff]
    %v248 = vld [vmem:[#allocation5 + $0x88] sm:$0xff]
    %v249 = vld [vmem:[#allocation5 + $0x90] sm:$0xff]
    %v250 = vld [vmem:[#allocation5 + $0x98] sm:$0xff]
    %v251 = vld [vmem:[#allocation5 + $0xa0] sm:$0xff]
    %v252 = vld [vmem:[#allocation5 + $0xa8] sm:$0xff]
    %v253 = vld [vmem:[#allocation5 + $0xb0] sm:$0xff]
    %v254 = vld [vmem:[#allocation5 + $0xb8] sm:$0xff]
    %v255 = vld [vmem:[#allocation5 + $0xc0] sm:$0xff]
    %v256 = vld [vmem:[#allocation5 + $0xc8] sm:$0xff]
    %v257 = vld [vmem:[#allocation5 + $0xd0] sm:$0xff]
    %v258 = vld [vmem:[#allocation5 + $0xd8] sm:$0xff]
    %v259 = vld [vmem:[#allocation5 + $0xe0] sm:$0xff]
    %v260 = vld [vmem:[#allocation5 + $0xe8] sm:$0xff]
    %v261 = vld [vmem:[#allocation5 + $0xf0] sm:$0xff]
    %v262 = vld [vmem:[#allocation5 + $0xf8] sm:$0xff]
    %v263 = vld [vmem:[#allocation5 + $0x100] sm:$0xff]
    %v264 = vld [vmem:[#allocation5 + $0x108] sm:$0xff]
    %v265 = vld [vmem:[#allocation5 + $0x110] sm:$0xff]
    %v266 = vld [vmem:[#allocation5 + $0x118] sm:$0xff]
    %v267 = vld [vmem:[#allocation5 + $0x120] sm:$0xff]
    %v268 = vld [vmem:[#allocation5 + $0x128] sm:$0xff]
    %v269 = vld [vmem:[#allocation5 + $0x130] sm:$0xff]
    %v270 = vld [vmem:[#allocation5 + $0x138] sm:$0xff]
    %v271 = vld [vmem:[#allocation5 + $0x140] sm:$0xff]
    %v272 = vld [vmem:[#allocation5 + $0x148] sm:$0xff]
    %v273 = vld [vmem:[#allocation5 + $0x150] sm:$0xff]
    %v274 = vld [vmem:[#allocation5 + $0x158] sm:$0xff]
    %v275 = vld [vmem:[#allocation5 + $0x160] sm:$0xff]
    %v276 = vld [vmem:[#allocation5 + $0x168] sm:$0xff]
    %v277 = vld [vmem:[#allocation5 + $0x170] sm:$0xff]
    %v278 = vld [vmem:[#allocation5 + $0x178] sm:$0xff]
    %v295 = vunpack.c.l.b16 %v263
    %v296 = vunpack.c.h.b16 %v263
    %v297 = vunpack.c.l.b16 %v264
    %v298 = vunpack.c.h.b16 %v264
    %v299 = vunpack.c.l.b16 %v265
    %v300 = vunpack.c.h.b16 %v265
    %v301 = vunpack.c.l.b16 %v266
    %v302 = vunpack.c.h.b16 %v266
    %v303 = vunpack.c.l.b16 %v267
    %v304 = vunpack.c.h.b16 %v267
    %v305 = vunpack.c.l.b16 %v268
    %v306 = vunpack.c.h.b16 %v268
    %v307 = vunpack.c.l.b16 %v269
    %v308 = vunpack.c.h.b16 %v269
    %v309 = vunpack.c.l.b16 %v270
    %v310 = vunpack.c.h.b16 %v270
    %v311 = vunpack.c.l.b16 %v271
    %v312 = vunpack.c.h.b16 %v271
    %v313 = vunpack.c.l.b16 %v272
    %v314 = vunpack.c.h.b16 %v272
    %v315 = vunpack.c.l.b16 %v273
    %v316 = vunpack.c.h.b16 %v273
    %v317 = vunpack.c.l.b16 %v274
    %v318 = vunpack.c.h.b16 %v274
    %v319 = vunpack.c.l.b16 %v275
    %v320 = vunpack.c.h.b16 %v275
    %v321 = vunpack.c.l.b16 %v276
    %v322 = vunpack.c.h.b16 %v276
    %v323 = vunpack.c.l.b16 %v277
    %v324 = vunpack.c.h.b16 %v277
    %v325 = vunpack.c.l.b16 %v278
    %v326 = vunpack.c.h.b16 %v278
    %v327 = vpack.c.b16 %v297, %v295
    %v328 = vpack.c.b16 %v298, %v296
    %v329 = vpack.c.b16 %v301, %v299
    %v330 = vpack.c.b16 %v302, %v300
    %v331 = vpack.c.b16 %v305, %v303
    %v332 = vpack.c.b16 %v306, %v304
    %v333 = vpack.c.b16 %v309, %v307
    %v334 = vpack.c.b16 %v310, %v308
    %v335 = vpack.c.b16 %v313, %v311
    %v336 = vpack.c.b16 %v314, %v312
    %v337 = vpack.c.b16 %v317, %v315
    %v338 = vpack.c.b16 %v318, %v316
    %v339 = vpack.c.b16 %v321, %v319
    %v340 = vpack.c.b16 %v322, %v320
    %v341 = vpack.c.b16 %v325, %v323
    %v342 = vpack.c.b16 %v326, %v324
    %359 = vmatprep.subr.bf16.mxu0 %v328
    %360 = vmatpush1.bf16.msra.mxu0 %v327
    %361 = vmatprep.subr.bf16.mxu0 %v330
    %362 = vmatpush1.bf16.msra.mxu0 %v329
    %363 = vmatprep.subr.bf16.mxu0 %v332
    %364 = vmatpush1.bf16.msra.mxu0 %v331
    %365 = vmatprep.subr.bf16.mxu0 %v334
    %366 = vmatpush1.bf16.msra.mxu0 %v333
    %367 = vmatprep.subr.bf16.mxu0 %v336
    %368 = vmatpush1.bf16.msra.mxu0 %v335
    %369 = vmatprep.subr.bf16.mxu0 %v338
    %370 = vmatpush1.bf16.msra.mxu0 %v337
    %371 = vmatprep.subr.bf16.mxu0 %v340
    %372 = vmatpush1.bf16.msra.mxu0 %v339
    %373 = vmatprep.subr.bf16.mxu0 %v342
    %374 = vmatpush1.bf16.msra.mxu0 %v341
    %375 = vmatprep.subr.bf16.mxu0 0
    %376 = vmatpush1.bf16.msra.mxu0 0
    %377 = vmatprep.subr.bf16.mxu0 0
    %378 = vmatpush1.bf16.msra.mxu0 0
    %379 = vmatprep.subr.bf16.mxu0 0
    %380 = vmatpush1.bf16.msra.mxu0 0
    %381 = vmatprep.subr.bf16.mxu0 0
    %382 = vmatpush1.bf16.msra.mxu0 0
    %383 = vmatprep.subr.bf16.mxu0 0
    %384 = vmatpush1.bf16.msra.mxu0 0
    %385 = vmatprep.subr.bf16.mxu0 0
    %386 = vmatpush1.bf16.msra.mxu0 0
    %387 = vmatprep.subr.bf16.mxu0 0
    %388 = vmatpush1.bf16.msra.mxu0 0
    %389 = vmatprep.subr.bf16.mxu0 0
    %390 = vmatpush1.bf16.msra.mxu0 0
    %391 = vmatprep.mubr.bf16.mxu0 0
    %392 = vmatmul.mubr.bf16.gmra.mrb[0].mxu0 %v96
    %v393 = vpop.f32.mrb[0].mxu0
    %v394 = vadd.f32 0.0, %v393
    %v395 = vpop.f32.mrb[0].mxu0
    %v396 = vadd.f32 0.0, %v395
    %v397 = vpop.f32.mrb[0].mxu0
    %v398 = vadd.f32 0.0, %v397
    %v399 = vpop.f32.mrb[0].mxu0
    %v400 = vadd.f32 0.0, %v399
    %401 = vmatprep.mubr.bf16.mxu0 0
    %402 = vmatmul.mubr.bf16.gmra.mrb[0].mxu0 %v97
    %v403 = vpop.f32.mrb[0].mxu0
    %v404 = vadd.f32 0.0, %v403
    %v405 = vpop.f32.mrb[0].mxu0
    %v406 = vadd.f32 0.0, %v405
    %v407 = vpop.f32.mrb[0].mxu0
    %v408 = vadd.f32 0.0, %v407
    %v409 = vpop.f32.mrb[0].mxu0
    %v410 = vadd.f32 0.0, %v409
    %411 = vdwg.mxu0
    %v412 = vrot.slane %v229, 7
    %v413 = vrot.slane %v231, 7
    %v414 = vrot.slane %v233, 7
    %v415 = vrot.slane %v235, 7
    %v416 = vrot.slane %v239, 7
    %v417 = vrot.slane %v241, 7
    %v418 = vrot.slane %v243, 7
    %v419 = vrot.slane %v245, 7
    %vm420 = vcmp.lt.s32.totalorder %v68, 1
    %v421 = vsel %vm420, %v416, %v418
    %v422 = vsel %vm420, %v417, %v419
    %v423 = vsel %vm420, %v414, %v416
    %v424 = vsel %vm420, %v415, %v417
    %v425 = vsel %vm420, %v412, %v414
    %v426 = vsel %vm420, %v413, %v415
    %v427 = vsel %vm420, %v418, %v412
    %v428 = vsel %vm420, %v419, %v413
    %v429 = vsel %vm80, 0.0, %v427
    %v430 = vsel %vm80, 0.0, %v428
    %v431 = vsel %vm81, 0.0, %v425
    %v432 = vsel %vm81, 0.0, %v426
    %v433 = vsel %vm82, 0.0, %v423
    %v434 = vsel %vm82, 0.0, %v424
    %v435 = vsel %vm83, 0.0, %v421
    %v436 = vsel %vm83, 0.0, %v422
    %v437 = vrot.slane %v394, 1
    %v438 = vrot.slane %v396, 1
    %v439 = vrot.slane %v398, 1
    %v440 = vrot.slane %v400, 1
    %v441 = vrot.slane %v404, 1
    %v442 = vrot.slane %v406, 1
    %v443 = vrot.slane %v408, 1
    %v444 = vrot.slane %v410, 1
    %vm445 = vcmp.lt.s32.totalorder %v68, 7
    %v446 = vsel %vm445, %v441, %v443
    %v447 = vsel %vm445, %v442, %v444
    %v448 = vsel %vm445, %v439, %v441
    %v449 = vsel %vm445, %v440, %v442
    %v450 = vsel %vm445, %v437, %v439
    %v451 = vsel %vm445, %v438, %v440
    %v452 = vsel %vm445, %v443, %v437
    %v453 = vsel %vm445, %v444, %v438
    %v454 = vsel %vm92, 0.0, %v450
    %v455 = vsel %vm92, 0.0, %v451
    %v456 = vsel %vm93, 0.0, %v448
    %v457 = vsel %vm93, 0.0, %v449
    %v458 = vsel %vm94, 0.0, %v446
    %v459 = vsel %vm94, 0.0, %v447
    %v460 = vsel %vm95, 0.0, %v452
    %v461 = vsel %vm95, 0.0, %v453
    %v478 = vunpack.c.l.b16 %v247
    %v479 = vunpack.c.h.b16 %v247
    %v480 = vunpack.c.l.b16 %v248
    %v481 = vunpack.c.h.b16 %v248
    %v482 = vunpack.c.l.b16 %v249
    %v483 = vunpack.c.h.b16 %v249
    %v484 = vunpack.c.l.b16 %v250
    %v485 = vunpack.c.h.b16 %v250
    %v486 = vunpack.c.l.b16 %v251
    %v487 = vunpack.c.h.b16 %v251
    %v488 = vunpack.c.l.b16 %v252
    %v489 = vunpack.c.h.b16 %v252
    %v490 = vunpack.c.l.b16 %v253
    %v491 = vunpack.c.h.b16 %v253
    %v492 = vunpack.c.l.b16 %v254
    %v493 = vunpack.c.h.b16 %v254
    %v494 = vunpack.c.l.b16 %v255
    %v495 = vunpack.c.h.b16 %v255
    %v496 = vunpack.c.l.b16 %v256
    %v497 = vunpack.c.h.b16 %v256
    %v498 = vunpack.c.l.b16 %v257
    %v499 = vunpack.c.h.b16 %v257
    %v500 = vunpack.c.l.b16 %v258
    %v501 = vunpack.c.h.b16 %v258
    %v502 = vunpack.c.l.b16 %v259
    %v503 = vunpack.c.h.b16 %v259
    %v504 = vunpack.c.l.b16 %v260
    %v505 = vunpack.c.h.b16 %v260
    %v506 = vunpack.c.l.b16 %v261
    %v507 = vunpack.c.h.b16 %v261
    %v508 = vunpack.c.l.b16 %v262
    %v509 = vunpack.c.h.b16 %v262
    %v510 = vpack.c.b16 %v480, %v478
    %v511 = vpack.c.b16 %v481, %v479
    %v512 = vpack.c.b16 %v484, %v482
    %v513 = vpack.c.b16 %v485, %v483
    %v514 = vpack.c.b16 %v488, %v486
    %v515 = vpack.c.b16 %v489, %v487
    %v516 = vpack.c.b16 %v492, %v490
    %v517 = vpack.c.b16 %v493, %v491
    %v518 = vpack.c.b16 %v496, %v494
    %v519 = vpack.c.b16 %v497, %v495
    %v520 = vpack.c.b16 %v500, %v498
    %v521 = vpack.c.b16 %v501, %v499
    %v522 = vpack.c.b16 %v504, %v502
    %v523 = vpack.c.b16 %v505, %v503
    %v524 = vpack.c.b16 %v508, %v506
    %v525 = vpack.c.b16 %v509, %v507
    %542 = vmatprep.subr.bf16.mxu0 %v511
    %543 = vmatpush1.bf16.msra.mxu0 %v510
    %544 = vmatprep.subr.bf16.mxu0 %v513
    %545 = vmatpush1.bf16.msra.mxu0 %v512
    %546 = vmatprep.subr.bf16.mxu0 %v515
    %547 = vmatpush1.bf16.msra.mxu0 %v514
    %548 = vmatprep.subr.bf16.mxu0 %v517
    %549 = vmatpush1.bf16.msra.mxu0 %v516
    %550 = vmatprep.subr.bf16.mxu0 %v519
    %551 = vmatpush1.bf16.msra.mxu0 %v518
    %552 = vmatprep.subr.bf16.mxu0 %v521
    %553 = vmatpush1.bf16.msra.mxu0 %v520
    %554 = vmatprep.subr.bf16.mxu0 %v523
    %555 = vmatpush1.bf16.msra.mxu0 %v522
    %556 = vmatprep.subr.bf16.mxu0 %v525
    %557 = vmatpush1.bf16.msra.mxu0 %v524
    %558 = vmatprep.subr.bf16.mxu0 0
    %559 = vmatpush1.bf16.msra.mxu0 0
    %560 = vmatprep.subr.bf16.mxu0 0
    %561 = vmatpush1.bf16.msra.mxu0 0
    %562 = vmatprep.subr.bf16.mxu0 0
    %563 = vmatpush1.bf16.msra.mxu0 0
    %564 = vmatprep.subr.bf16.mxu0 0
    %565 = vmatpush1.bf16.msra.mxu0 0
    %566 = vmatprep.subr.bf16.mxu0 0
    %567 = vmatpush1.bf16.msra.mxu0 0
    %568 = vmatprep.subr.bf16.mxu0 0
    %569 = vmatpush1.bf16.msra.mxu0 0
    %570 = vmatprep.subr.bf16.mxu0 0
    %571 = vmatpush1.bf16.msra.mxu0 0
    %572 = vmatprep.subr.bf16.mxu0 0
    %573 = vmatpush1.bf16.msra.mxu0 0
    %574 = vmatprep.mubr.bf16.mxu0 0
    %575 = vmatmul.mubr.bf16.gmra.mrb[0].mxu0 %v96
    %v576 = vpop.f32.mrb[0].mxu0
    %v577 = vadd.f32 %v429, %v576
    %v578 = vpop.f32.mrb[0].mxu0
    %v579 = vadd.f32 %v430, %v578
    %v580 = vpop.f32.mrb[0].mxu0
    %v581 = vadd.f32 %v431, %v580
    %v582 = vpop.f32.mrb[0].mxu0
    %v583 = vadd.f32 %v432, %v582
    %584 = vmatprep.mubr.bf16.mxu0 0
    %585 = vmatmul.mubr.bf16.gmra.mrb[0].mxu0 %v97
    %v586 = vpop.f32.mrb[0].mxu0
    %v587 = vadd.f32 %v433, %v586
    %v588 = vpop.f32.mrb[0].mxu0
    %v589 = vadd.f32 %v434, %v588
    %v590 = vpop.f32.mrb[0].mxu0
    %v591 = vadd.f32 %v435, %v590
    %v592 = vpop.f32.mrb[0].mxu0
    %v593 = vadd.f32 %v436, %v592
    %594 = vdwg.mxu0
    %v595 = vadd.f32 %v577, %v454
    %v596 = vadd.f32 %v579, %v455
    %v597 = vadd.f32 %v581, %v456
    %v598 = vadd.f32 %v583, %v457
    %v599 = vadd.f32 %v587, %v458
    %v600 = vadd.f32 %v589, %v459
    %v601 = vadd.f32 %v591, %v460
    %v602 = vadd.f32 %v593, %v461
    %v603 = vld [vmem:[%s2] sm:$0x3]
    %v605 = vlaneseq
    %v606 = vshrl.u32 %v605, 7
    %v607 = vsub.s32 0, %v606
    %v608 = vrot.slane %v603, %v607
    %v609 = vlaneseq
    %v610 = vshrl.u32 %v609, 7
    %v611 = vsub.s32 1, %v610
    %v612 = vrot.slane %v603, %v611
    %v615 = vadd.f32 %v595, %v608
    %v616 = vadd.f32 %v596, %v612
    %v617 = vadd.f32 %v597, %v608
    %v618 = vadd.f32 %v598, %v612
    %v619 = vadd.f32 %v599, %v608
    %v620 = vadd.f32 %v600, %v612
    %v621 = vadd.f32 %v601, %v608
    %v622 = vadd.f32 %v602, %v612
    %v623 = vmax.f32 %v615, %v616
    %v624 = vmax.f32 %v617, %v618
    %v625 = vmax.f32 %v619, %v620
    %v626 = vmax.f32 %v621, %v622
    %v627 = vpack.c.bf16 %v624, %v623
    %v628 = vpack.c.bf16 %v626, %v625
    %v629 = vld [vmem:[#allocation7] sm:$0xff]
    %v630 = vld [vmem:[#allocation7 + $0x8] sm:$0xff]
    %v631 = vld [vmem:[#allocation7 + $0x10] sm:$0xff]
    %v632 = vld [vmem:[#allocation7 + $0x18] sm:$0xff]
    %v633 = vld [vmem:[#allocation7 + $0x20] sm:$0xff]
    %v634 = vld [vmem:[#allocation7 + $0x28] sm:$0xff]
    %v635 = vld [vmem:[#allocation7 + $0x30] sm:$0xff]
    %v636 = vld [vmem:[#allocation7 + $0x38] sm:$0xff]
    %v637 = vld [vmem:[#allocation7 + $0x40] sm:$0xff]
    %v638 = vld [vmem:[#allocation7 + $0x48] sm:$0xff]
    %v639 = vld [vmem:[#allocation7 + $0x50] sm:$0xff]
    %v640 = vld [vmem:[#allocation7 + $0x58] sm:$0xff]
    %v641 = vld [vmem:[#allocation7 + $0x60] sm:$0xff]
    %v642 = vld [vmem:[#allocation7 + $0x68] sm:$0xff]
    %v643 = vld [vmem:[#allocation7 + $0x70] sm:$0xff]
    %v644 = vld [vmem:[#allocation7 + $0x78] sm:$0xff]
    %v661 = vunpack.c.l.b16 %v629
    %v662 = vunpack.c.h.b16 %v629
    %v663 = vunpack.c.l.b16 %v630
    %v664 = vunpack.c.h.b16 %v630
    %v665 = vunpack.c.l.b16 %v631
    %v666 = vunpack.c.h.b16 %v631
    %v667 = vunpack.c.l.b16 %v632
    %v668 = vunpack.c.h.b16 %v632
    %v669 = vunpack.c.l.b16 %v633
    %v670 = vunpack.c.h.b16 %v633
    %v671 = vunpack.c.l.b16 %v634
    %v672 = vunpack.c.h.b16 %v634
    %v673 = vunpack.c.l.b16 %v635
    %v674 = vunpack.c.h.b16 %v635
    %v675 = vunpack.c.l.b16 %v636
    %v676 = vunpack.c.h.b16 %v636
    %v677 = vunpack.c.l.b16 %v637
    %v678 = vunpack.c.h.b16 %v637
    %v679 = vunpack.c.l.b16 %v638
    %v680 = vunpack.c.h.b16 %v638
    %v681 = vunpack.c.l.b16 %v639
    %v682 = vunpack.c.h.b16 %v639
    %v683 = vunpack.c.l.b16 %v640
    %v684 = vunpack.c.h.b16 %v640
    %v685 = vunpack.c.l.b16 %v641
    %v686 = vunpack.c.h.b16 %v641
    %v687 = vunpack.c.l.b16 %v642
    %v688 = vunpack.c.h.b16 %v642
    %v689 = vunpack.c.l.b16 %v643
    %v690 = vunpack.c.h.b16 %v643
    %v691 = vunpack.c.l.b16 %v644
    %v692 = vunpack.c.h.b16 %v644
    %v693 = vpack.c.b16 %v663, %v661
    %v694 = vpack.c.b16 %v664, %v662
    %v695 = vpack.c.b16 %v667, %v665
    %v696 = vpack.c.b16 %v668, %v666
    %v697 = vpack.c.b16 %v671, %v669
    %v698 = vpack.c.b16 %v672, %v670
    %v699 = vpack.c.b16 %v675, %v673
    %v700 = vpack.c.b16 %v676, %v674
    %v701 = vpack.c.b16 %v679, %v677
    %v702 = vpack.c.b16 %v680, %v678
    %v703 = vpack.c.b16 %v683, %v681
    %v704 = vpack.c.b16 %v684, %v682
    %v705 = vpack.c.b16 %v687, %v685
    %v706 = vpack.c.b16 %v688, %v686
    %v707 = vpack.c.b16 %v691, %v689
    %v708 = vpack.c.b16 %v692, %v690
    %725 = vmatprep.subr.bf16.mxu0 %v694
    %726 = vmatpush1.bf16.msra.mxu0 %v693
    %727 = vmatprep.subr.bf16.mxu0 %v696
    %728 = vmatpush1.bf16.msra.mxu0 %v695
    %729 = vmatprep.subr.bf16.mxu0 %v698
    %730 = vmatpush1.bf16.msra.mxu0 %v697
    %731 = vmatprep.subr.bf16.mxu0 %v700
    %732 = vmatpush1.bf16.msra.mxu0 %v699
    %733 = vmatprep.subr.bf16.mxu0 %v702
    %734 = vmatpush1.bf16.msra.mxu0 %v701
    %735 = vmatprep.subr.bf16.mxu0 %v704
    %736 = vmatpush1.bf16.msra.mxu0 %v703
    %737 = vmatprep.subr.bf16.mxu0 %v706
    %738 = vmatpush1.bf16.msra.mxu0 %v705
    %739 = vmatprep.subr.bf16.mxu0 %v708
    %740 = vmatpush1.bf16.msra.mxu0 %v707
    %741 = vmatprep.subr.bf16.mxu0 0
    %742 = vmatpush1.bf16.msra.mxu0 0
    %743 = vmatprep.subr.bf16.mxu0 0
    %744 = vmatpush1.bf16.msra.mxu0 0
    %745 = vmatprep.subr.bf16.mxu0 0
    %746 = vmatpush1.bf16.msra.mxu0 0
    %747 = vmatprep.subr.bf16.mxu0 0
    %748 = vmatpush1.bf16.msra.mxu0 0
    %749 = vmatprep.subr.bf16.mxu0 0
    %750 = vmatpush1.bf16.msra.mxu0 0
    %751 = vmatprep.subr.bf16.mxu0 0
    %752 = vmatpush1.bf16.msra.mxu0 0
    %753 = vmatprep.subr.bf16.mxu0 0
    %754 = vmatpush1.bf16.msra.mxu0 0
    %755 = vmatprep.subr.bf16.mxu0 0
    %756 = vmatpush1.bf16.msra.mxu0 0
    %757 = vmatprep.mubr.bf16.mxu0 0
    %758 = vmatmul.mubr.bf16.gmra.mrb[0].mxu0 %v627
    %v759 = vpop.f32.mrb[0].mxu0
    %v760 = vadd.f32 0.0, %v759
    %v761 = vpop.f32.mrb[0].mxu0
    %v762 = vadd.f32 0.0, %v761
    %v763 = vpop.f32.mrb[0].mxu0
    %v764 = vadd.f32 0.0, %v763
    %v765 = vpop.f32.mrb[0].mxu0
    %v766 = vadd.f32 0.0, %v765
    %767 = vmatprep.mubr.bf16.mxu0 0
    %768 = vmatmul.mubr.bf16.gmra.mrb[0].mxu0 %v628
    %v769 = vpop.f32.mrb[0].mxu0
    %v770 = vadd.f32 0.0, %v769
    %v771 = vpop.f32.mrb[0].mxu0
    %v772 = vadd.f32 0.0, %v771
    %v773 = vpop.f32.mrb[0].mxu0
    %v774 = vadd.f32 0.0, %v773
    %v775 = vpop.f32.mrb[0].mxu0
    %v776 = vadd.f32 0.0, %v775
    %777 = vdwg.mxu0
    %v778 = vld [vmem:[#allocation7 + $0x80] sm:$0xff]
    %v779 = vld [vmem:[#allocation7 + $0x88] sm:$0xff]
    %v780 = vld [vmem:[#allocation7 + $0x90] sm:$0xff]
    %v781 = vld [vmem:[#allocation7 + $0x98] sm:$0xff]
    %v782 = vld [vmem:[#allocation7 + $0xa0] sm:$0xff]
    %v783 = vld [vmem:[#allocation7 + $0xa8] sm:$0xff]
    %v784 = vld [vmem:[#allocation7 + $0xb0] sm:$0xff]
    %v785 = vld [vmem:[#allocation7 + $0xb8] sm:$0xff]
    %v786 = vld [vmem:[#allocation7 + $0xc0] sm:$0xff]
    %v787 = vld [vmem:[#allocation7 + $0xc8] sm:$0xff]
    %v788 = vld [vmem:[#allocation7 + $0xd0] sm:$0xff]
    %v789 = vld [vmem:[#allocation7 + $0xd8] sm:$0xff]
    %v790 = vld [vmem:[#allocation7 + $0xe0] sm:$0xff]
    %v791 = vld [vmem:[#allocation7 + $0xe8] sm:$0xff]
    %v792 = vld [vmem:[#allocation7 + $0xf0] sm:$0xff]
    %v793 = vld [vmem:[#allocation7 + $0xf8] sm:$0xff]
    %v794 = vld [vmem:[#allocation7 + $0x100] sm:$0xff]
    %v795 = vld [vmem:[#allocation7 + $0x108] sm:$0xff]
    %v796 = vld [vmem:[#allocation7 + $0x110] sm:$0xff]
    %v797 = vld [vmem:[#allocation7 + $0x118] sm:$0xff]
    %v798 = vld [vmem:[#allocation7 + $0x120] sm:$0xff]
    %v799 = vld [vmem:[#allocation7 + $0x128] sm:$0xff]
    %v800 = vld [vmem:[#allocation7 + $0x130] sm:$0xff]
    %v801 = vld [vmem:[#allocation7 + $0x138] sm:$0xff]
    %v802 = vld [vmem:[#allocation7 + $0x140] sm:$0xff]
    %v803 = vld [vmem:[#allocation7 + $0x148] sm:$0xff]
    %v804 = vld [vmem:[#allocation7 + $0x150] sm:$0xff]
    %v805 = vld [vmem:[#allocation7 + $0x158] sm:$0xff]
    %v806 = vld [vmem:[#allocation7 + $0x160] sm:$0xff]
    %v807 = vld [vmem:[#allocation7 + $0x168] sm:$0xff]
    %v808 = vld [vmem:[#allocation7 + $0x170] sm:$0xff]
    %v809 = vld [vmem:[#allocation7 + $0x178] sm:$0xff]
    %v826 = vunpack.c.l.b16 %v794
    %v827 = vunpack.c.h.b16 %v794
    %v828 = vunpack.c.l.b16 %v795
    %v829 = vunpack.c.h.b16 %v795
    %v830 = vunpack.c.l.b16 %v796
    %v831 = vunpack.c.h.b16 %v796
    %v832 = vunpack.c.l.b16 %v797
    %v833 = vunpack.c.h.b16 %v797
    %v834 = vunpack.c.l.b16 %v798
    %v835 = vunpack.c.h.b16 %v798
    %v836 = vunpack.c.l.b16 %v799
    %v837 = vunpack.c.h.b16 %v799
    %v838 = vunpack.c.l.b16 %v800
    %v839 = vunpack.c.h.b16 %v800
    %v840 = vunpack.c.l.b16 %v801
    %v841 = vunpack.c.h.b16 %v801
    %v842 = vunpack.c.l.b16 %v802
    %v843 = vunpack.c.h.b16 %v802
    %v844 = vunpack.c.l.b16 %v803
    %v845 = vunpack.c.h.b16 %v803
    %v846 = vunpack.c.l.b16 %v804
    %v847 = vunpack.c.h.b16 %v804
    %v848 = vunpack.c.l.b16 %v805
    %v849 = vunpack.c.h.b16 %v805
    %v850 = vunpack.c.l.b16 %v806
    %v851 = vunpack.c.h.b16 %v806
    %v852 = vunpack.c.l.b16 %v807
    %v853 = vunpack.c.h.b16 %v807
    %v854 = vunpack.c.l.b16 %v808
    %v855 = vunpack.c.h.b16 %v808
    %v856 = vunpack.c.l.b16 %v809
    %v857 = vunpack.c.h.b16 %v809
    %v858 = vpack.c.b16 %v828, %v826
    %v859 = vpack.c.b16 %v829, %v827
    %v860 = vpack.c.b16 %v832, %v830
    %v861 = vpack.c.b16 %v833, %v831
    %v862 = vpack.c.b16 %v836, %v834
    %v863 = vpack.c.b16 %v837, %v835
    %v864 = vpack.c.b16 %v840, %v838
    %v865 = vpack.c.b16 %v841, %v839
    %v866 = vpack.c.b16 %v844, %v842
    %v867 = vpack.c.b16 %v845, %v843
    %v868 = vpack.c.b16 %v848, %v846
    %v869 = vpack.c.b16 %v849, %v847
    %v870 = vpack.c.b16 %v852, %v850
    %v871 = vpack.c.b16 %v853, %v851
    %v872 = vpack.c.b16 %v856, %v854
    %v873 = vpack.c.b16 %v857, %v855
    %890 = vmatprep.subr.bf16.mxu0 %v859
    %891 = vmatpush1.bf16.msra.mxu0 %v858
    %892 = vmatprep.subr.bf16.mxu0 %v861
    %893 = vmatpush1.bf16.msra.mxu0 %v860
    %894 = vmatprep.subr.bf16.mxu0 %v863
    %895 = vmatpush1.bf16.msra.mxu0 %v862
    %896 = vmatprep.subr.bf16.mxu0 %v865
    %897 = vmatpush1.bf16.msra.mxu0 %v864
    %898 = vmatprep.subr.bf16.mxu0 %v867
    %899 = vmatpush1.bf16.msra.mxu0 %v866
    %900 = vmatprep.subr.bf16.mxu0 %v869
    %901 = vmatpush1.bf16.msra.mxu0 %v868
    %902 = vmatprep.subr.bf16.mxu0 %v871
    %903 = vmatpush1.bf16.msra.mxu0 %v870
    %904 = vmatprep.subr.bf16.mxu0 %v873
    %905 = vmatpush1.bf16.msra.mxu0 %v872
    %906 = vmatprep.subr.bf16.mxu0 0
    %907 = vmatpush1.bf16.msra.mxu0 0
    %908 = vmatprep.subr.bf16.mxu0 0
    %909 = vmatpush1.bf16.msra.mxu0 0
    %910 = vmatprep.subr.bf16.mxu0 0
    %911 = vmatpush1.bf16.msra.mxu0 0
    %912 = vmatprep.subr.bf16.mxu0 0
    %913 = vmatpush1.bf16.msra.mxu0 0
    %914 = vmatprep.subr.bf16.mxu0 0
    %915 = vmatpush1.bf16.msra.mxu0 0
    %916 = vmatprep.subr.bf16.mxu0 0
    %917 = vmatpush1.bf16.msra.mxu0 0
    %918 = vmatprep.subr.bf16.mxu0 0
    %919 = vmatpush1.bf16.msra.mxu0 0
    %920 = vmatprep.subr.bf16.mxu0 0
    %921 = vmatpush1.bf16.msra.mxu0 0
    %922 = vmatprep.mubr.bf16.mxu0 0
    %923 = vmatmul.mubr.bf16.gmra.mrb[0].mxu0 %v627
    %v924 = vpop.f32.mrb[0].mxu0
    %v925 = vadd.f32 0.0, %v924
    %v926 = vpop.f32.mrb[0].mxu0
    %v927 = vadd.f32 0.0, %v926
    %v928 = vpop.f32.mrb[0].mxu0
    %v929 = vadd.f32 0.0, %v928
    %v930 = vpop.f32.mrb[0].mxu0
    %v931 = vadd.f32 0.0, %v930
    %932 = vmatprep.mubr.bf16.mxu0 0
    %933 = vmatmul.mubr.bf16.gmra.mrb[0].mxu0 %v628
    %v934 = vpop.f32.mrb[0].mxu0
    %v935 = vadd.f32 0.0, %v934
    %v936 = vpop.f32.mrb[0].mxu0
    %v937 = vadd.f32 0.0, %v936
    %v938 = vpop.f32.mrb[0].mxu0
    %v939 = vadd.f32 0.0, %v938
    %v940 = vpop.f32.mrb[0].mxu0
    %v941 = vadd.f32 0.0, %v940
    %942 = vdwg.mxu0
    %v943 = vrot.slane %v760, 7
    %v944 = vrot.slane %v762, 7
    %v945 = vrot.slane %v764, 7
    %v946 = vrot.slane %v766, 7
    %v947 = vrot.slane %v770, 7
    %v948 = vrot.slane %v772, 7
    %v949 = vrot.slane %v774, 7
    %v950 = vrot.slane %v776, 7
    %v951 = vsel %vm420, %v947, %v949
    %v952 = vsel %vm420, %v948, %v950
    %v953 = vsel %vm420, %v945, %v947
    %v954 = vsel %vm420, %v946, %v948
    %v955 = vsel %vm420, %v943, %v945
    %v956 = vsel %vm420, %v944, %v946
    %v957 = vsel %vm420, %v949, %v943
    %v958 = vsel %vm420, %v950, %v944
    %v959 = vsel %vm80, 0.0, %v957
    %v960 = vsel %vm80, 0.0, %v958
    %v961 = vsel %vm81, 0.0, %v955
    %v962 = vsel %vm81, 0.0, %v956
    %v963 = vsel %vm82, 0.0, %v953
    %v964 = vsel %vm82, 0.0, %v954
    %v965 = vsel %vm83, 0.0, %v951
    %v966 = vsel %vm83, 0.0, %v952
    %v967 = vrot.slane %v925, 1
    %v968 = vrot.slane %v927, 1
    %v969 = vrot.slane %v929, 1
    %v970 = vrot.slane %v931, 1
    %v971 = vrot.slane %v935, 1
    %v972 = vrot.slane %v937, 1
    %v973 = vrot.slane %v939, 1
    %v974 = vrot.slane %v941, 1
    %v975 = vsel %vm445, %v971, %v973
    %v976 = vsel %vm445, %v972, %v974
    %v977 = vsel %vm445, %v969, %v971
    %v978 = vsel %vm445, %v970, %v972
    %v979 = vsel %vm445, %v967, %v969
    %v980 = vsel %vm445, %v968, %v970
    %v981 = vsel %vm445, %v973, %v967
    %v982 = vsel %vm445, %v974, %v968
    %v983 = vsel %vm92, 0.0, %v979
    %v984 = vsel %vm92, 0.0, %v980
    %v985 = vsel %vm93, 0.0, %v977
    %v986 = vsel %vm93, 0.0, %v978
    %v987 = vsel %vm94, 0.0, %v975
    %v988 = vsel %vm94, 0.0, %v976
    %v989 = vsel %vm95, 0.0, %v981
    %v990 = vsel %vm95, 0.0, %v982
    %v1007 = vunpack.c.l.b16 %v778
    %v1008 = vunpack.c.h.b16 %v778
    %v1009 = vunpack.c.l.b16 %v779
    %v1010 = vunpack.c.h.b16 %v779
    %v1011 = vunpack.c.l.b16 %v780
    %v1012 = vunpack.c.h.b16 %v780
    %v1013 = vunpack.c.l.b16 %v781
    %v1014 = vunpack.c.h.b16 %v781
    %v1015 = vunpack.c.l.b16 %v782
    %v1016 = vunpack.c.h.b16 %v782
    %v1017 = vunpack.c.l.b16 %v783
    %v1018 = vunpack.c.h.b16 %v783
    %v1019 = vunpack.c.l.b16 %v784
    %v1020 = vunpack.c.h.b16 %v784
    %v1021 = vunpack.c.l.b16 %v785
    %v1022 = vunpack.c.h.b16 %v785
    %v1023 = vunpack.c.l.b16 %v786
    %v1024 = vunpack.c.h.b16 %v786
    %v1025 = vunpack.c.l.b16 %v787
    %v1026 = vunpack.c.h.b16 %v787
    %v1027 = vunpack.c.l.b16 %v788
    %v1028 = vunpack.c.h.b16 %v788
    %v1029 = vunpack.c.l.b16 %v789
    %v1030 = vunpack.c.h.b16 %v789
    %v1031 = vunpack.c.l.b16 %v790
    %v1032 = vunpack.c.h.b16 %v790
    %v1033 = vunpack.c.l.b16 %v791
    %v1034 = vunpack.c.h.b16 %v791
    %v1035 = vunpack.c.l.b16 %v792
    %v1036 = vunpack.c.h.b16 %v792
    %v1037 = vunpack.c.l.b16 %v793
    %v1038 = vunpack.c.h.b16 %v793
    %v1039 = vpack.c.b16 %v1009, %v1007
    %v1040 = vpack.c.b16 %v1010, %v1008
    %v1041 = vpack.c.b16 %v1013, %v1011
    %v1042 = vpack.c.b16 %v1014, %v1012
    %v1043 = vpack.c.b16 %v1017, %v1015
    %v1044 = vpack.c.b16 %v1018, %v1016
    %v1045 = vpack.c.b16 %v1021, %v1019
    %v1046 = vpack.c.b16 %v1022, %v1020
    %v1047 = vpack.c.b16 %v1025, %v1023
    %v1048 = vpack.c.b16 %v1026, %v1024
    %v1049 = vpack.c.b16 %v1029, %v1027
    %v1050 = vpack.c.b16 %v1030, %v1028
    %v1051 = vpack.c.b16 %v1033, %v1031
    %v1052 = vpack.c.b16 %v1034, %v1032
    %v1053 = vpack.c.b16 %v1037, %v1035
    %v1054 = vpack.c.b16 %v1038, %v1036
    %1071 = vmatprep.subr.bf16.mxu0 %v1040
    %1072 = vmatpush1.bf16.msra.mxu0 %v1039
    %1073 = vmatprep.subr.bf16.mxu0 %v1042
    %1074 = vmatpush1.bf16.msra.mxu0 %v1041
    %1075 = vmatprep.subr.bf16.mxu0 %v1044
    %1076 = vmatpush1.bf16.msra.mxu0 %v1043
    %1077 = vmatprep.subr.bf16.mxu0 %v1046
    %1078 = vmatpush1.bf16.msra.mxu0 %v1045
    %1079 = vmatprep.subr.bf16.mxu0 %v1048
    %1080 = vmatpush1.bf16.msra.mxu0 %v1047
    %1081 = vmatprep.subr.bf16.mxu0 %v1050
    %1082 = vmatpush1.bf16.msra.mxu0 %v1049
    %1083 = vmatprep.subr.bf16.mxu0 %v1052
    %1084 = vmatpush1.bf16.msra.mxu0 %v1051
    %1085 = vmatprep.subr.bf16.mxu0 %v1054
    %1086 = vmatpush1.bf16.msra.mxu0 %v1053
    %1087 = vmatprep.subr.bf16.mxu0 0
    %1088 = vmatpush1.bf16.msra.mxu0 0
    %1089 = vmatprep.subr.bf16.mxu0 0
    %1090 = vmatpush1.bf16.msra.mxu0 0
    %1091 = vmatprep.subr.bf16.mxu0 0
    %1092 = vmatpush1.bf16.msra.mxu0 0
    %1093 = vmatprep.subr.bf16.mxu0 0
    %1094 = vmatpush1.bf16.msra.mxu0 0
    %1095 = vmatprep.subr.bf16.mxu0 0
    %1096 = vmatpush1.bf16.msra.mxu0 0
    %1097 = vmatprep.subr.bf16.mxu0 0
    %1098 = vmatpush1.bf16.msra.mxu0 0
    %1099 = vmatprep.subr.bf16.mxu0 0
    %1100 = vmatpush1.bf16.msra.mxu0 0
    %1101 = vmatprep.subr.bf16.mxu0 0
    %1102 = vmatpush1.bf16.msra.mxu0 0
    %1103 = vmatprep.mubr.bf16.mxu0 0
    %1104 = vmatmul.mubr.bf16.gmra.mrb[0].mxu0 %v627
    %v1105 = vpop.f32.mrb[0].mxu0
    %v1106 = vadd.f32 %v959, %v1105
    %v1107 = vpop.f32.mrb[0].mxu0
    %v1108 = vadd.f32 %v960, %v1107
    %v1109 = vpop.f32.mrb[0].mxu0
    %v1110 = vadd.f32 %v961, %v1109
    %v1111 = vpop.f32.mrb[0].mxu0
    %v1112 = vadd.f32 %v962, %v1111
    %1113 = vmatprep.mubr.bf16.mxu0 0
    %1114 = vmatmul.mubr.bf16.gmra.mrb[0].mxu0 %v628
    %v1115 = vpop.f32.mrb[0].mxu0
    %v1116 = vadd.f32 %v963, %v1115
    %v1117 = vpop.f32.mrb[0].mxu0
    %v1118 = vadd.f32 %v964, %v1117
    %v1119 = vpop.f32.mrb[0].mxu0
    %v1120 = vadd.f32 %v965, %v1119
    %v1121 = vpop.f32.mrb[0].mxu0
    %v1122 = vadd.f32 %v966, %v1121
    %1123 = vdwg.mxu0
    %v1124 = vadd.f32 %v1106, %v983
    %v1125 = vadd.f32 %v1108, %v984
    %v1126 = vadd.f32 %v1110, %v985
    %v1127 = vadd.f32 %v1112, %v986
    %v1128 = vadd.f32 %v1116, %v987
    %v1129 = vadd.f32 %v1118, %v988
    %v1130 = vadd.f32 %v1120, %v989
    %v1131 = vadd.f32 %v1122, %v990
    %v1132 = vld [vmem:[%s4] sm:$0x3]
    %v1134 = vlaneseq
    %v1135 = vshrl.u32 %v1134, 7
    %v1136 = vsub.s32 0, %v1135
    %v1137 = vrot.slane %v1132, %v1136
    %v1138 = vlaneseq
    %v1139 = vshrl.u32 %v1138, 7
    %v1140 = vsub.s32 1, %v1139
    %v1141 = vrot.slane %v1132, %v1140
    %v1144 = vadd.f32 %v1124, %v1137
    %v1145 = vadd.f32 %v1125, %v1141
    %v1146 = vadd.f32 %v1126, %v1137
    %v1147 = vadd.f32 %v1127, %v1141
    %v1148 = vadd.f32 %v1128, %v1137
    %v1149 = vadd.f32 %v1129, %v1141
    %v1150 = vadd.f32 %v1130, %v1137
    %v1151 = vadd.f32 %v1131, %v1141
    %v1152 = vmax.f32 %v1144, %v1145
    %v1153 = vmax.f32 %v1146, %v1147
    %v1154 = vmax.f32 %v1148, %v1149
    %v1155 = vmax.f32 %v1150, %v1151
    %v1156 = vadd.f32 %v1152, %v63
    %v1157 = vadd.f32 %v1153, %v64
    %v1158 = vadd.f32 %v1154, %v65
    %v1159 = vadd.f32 %v1155, %v66
    %1160 = vst [vmem:[#allocation8] sm:$0xff] %v1156
    %1161 = vst [vmem:[#allocation8 + $0x8] sm:$0xff] %v1157
    %1162 = vst [vmem:[#allocation8 + $0x10] sm:$0xff] %v1158
    %1163 = vst [vmem:[#allocation8 + $0x18] sm:$0xff] %v1159
    // Predicated region
    $region34: #{tpu_custom_call.1} parent=1 // pred_check
      _
    $region35: #{tpu_custom_call.1} parent=1 // pred_check_branch
      %1165 = sbr.rel (0) target = $region37
    $region36: #{tpu_custom_call.1} parent=1 // pred_region
      %s1167 = ssub.s32 512, 512
      %1168 = vsyncadd [#allocation4], %s1167
      %s1169 = sshll.u32 [#allocation8], 4
      %s1170 = int_to_ptr.vmem [resolvable:$true] %s1169
      %1175 = dma.vmem_to_hbm [thread:$0]  %s1170, 512, %s5, [#allocation4], 128, 128, 8
    $region37: #{tpu_custom_call.1} parent=1 // pred_fallthru
      _
    // Predicated region
    $region38: #{tpu_custom_call.1} parent=1 // pred_check
      _
    $region39: #{tpu_custom_call.1} parent=1 // pred_check_branch
      %1177 = sbr.rel (0) target = $region41
    $region40: #{tpu_custom_call.1} parent=1 // pred_region
      %1178 = dma.done [#allocation4], 512
    $region41: #{tpu_custom_call.1} parent=1 // pred_fallthru
      _
    %1179 = vsyncpa [#allocation3], 1
    %1180 = vsyncpa [#allocation6], 1
    %1181 = vsyncpa [#allocation4], 1

</llo_original>
